<compile_context>
chip_gen: v6e
topology: v6e:2x2x1
jax: 0.10.0
libtpu: 0.0.40
codegen_flags: <defaults>
</compile_context>

<pallas_src>
import functools

import jax
import jax.numpy as jnp
from jax.experimental import pallas as pl


LANE = 128     # TPU vreg lane width; fused [hidden | output] columns padded to this.
SUBLANE = 8    # f32 sublane count; batch rows padded to a multiple of this.


def _round_up(n, m):
    return ((n + m - 1) // m) * m


def _full(shape):
    """Whole-array VMEM block for a grid=() pallas_call."""
    return pl.BlockSpec(shape, lambda: (0,) * len(shape))


# ----------------------------------------------------------------------------
# One-time parameter layout prep (hoisted off the per-step call path).
# ----------------------------------------------------------------------------
def prepare_params(w_i2h, b_i2h, w_i2o, b_i2o):
    """Fuse the two torch Linear layers into one lane-dense (in, out) weight.

    torch stores Linear weights as (out, in); transpose to (in, out), concat
    i2h | i2o along the output axis, zero-pad the output axis to LANE columns,
    and split the input axis into x-rows / h-rows so the kernel never needs a
    lane-concat of activations:
        cat(x, h) @ W_cat == x @ W_cat[:I] + h @ W_cat[I:]
    wh rows are additionally zero-padded to LANE so the recurrence can carry
    the full 128-lane fused slab as its hidden state (the extra lanes multiply
    against zero weight rows and contribute nothing).

    Returns wx (I, 128), wh (128, 128), b_cat (1, 128), all float32.
    """
    h_size, i_plus_h = w_i2h.shape
    o_size = w_i2o.shape[0]
    i_size = i_plus_h - h_size
    ho = h_size + o_size
    assert ho <= LANE and h_size <= LANE, "padding logic assumes H+O <= 128"

    w_cat = jnp.concatenate([w_i2h.T, w_i2o.T], axis=1)            # (I+H, H+O)
    w_cat = jnp.pad(w_cat, ((0, 0), (0, LANE - ho)))               # (I+H, 128)
    wx = w_cat[:i_size]                                            # (I,   128)
    wh = jnp.pad(w_cat[i_size:], ((0, LANE - h_size), (0, 0)))     # (128, 128)
    b_cat = jnp.pad(jnp.concatenate([b_i2h, b_i2o]),
                    (0, LANE - ho)).reshape(1, LANE)               # (1,   128)
    return (wx.astype(jnp.float32), wh.astype(jnp.float32),
            b_cat.astype(jnp.float32))


# ----------------------------------------------------------------------------
# Single step (== torch Rnn.forward): one fused lane-dense matmul pair.
# ----------------------------------------------------------------------------
def _rnn_cell_kernel(x_ref, h_ref, wx_ref, wh_ref, b_ref, fused_ref):
    fused = (
        jnp.dot(x_ref[...], wx_ref[...], preferred_element_type=jnp.float32)
        + jnp.dot(h_ref[...], wh_ref[...], preferred_element_type=jnp.float32)
        + b_ref[...]
    )
    fused_ref[...] = fused.astype(fused_ref.dtype)


def rnn_cell(x, h, wx, wh, b_cat, *, hidden_size, output_size):
    """One forward step.  Returns (output (B, O), new_hidden (B, H))."""
    B, I = x.shape
    Bp = _round_up(max(B, SUBLANE), SUBLANE)

    # Fill sublanes: pad batch to a multiple of 8 rows; pad hidden to 128 lanes.
    x_p = jnp.zeros((Bp, I), jnp.float32).at[:B].set(x.astype(jnp.float32))
    h_p = jnp.zeros((Bp, LANE), jnp.float32).at[:B, :hidden_size].set(
        h.astype(jnp.float32))

    fused = pl.pallas_call(
        _rnn_cell_kernel,
        out_shape=jax.ShapeDtypeStruct((Bp, LANE), jnp.float32),
        grid=(),
        in_specs=[_full((Bp, I)), _full((Bp, LANE)),
                  _full((I, LANE)), _full((LANE, LANE)), _full((1, LANE))],
        out_specs=_full((Bp, LANE)),
        cost_estimate=pl.CostEstimate(
            flops=2 * Bp * (I + LANE) * LANE,
            transcendentals=0,
            bytes_accessed=4 * (Bp * I + Bp * LANE + I * LANE
                                + LANE * LANE + LANE + Bp * LANE)),
    )(x_p, h_p, wx, wh, b_cat)

    out = fused[:B, hidden_size:hidden_size + output_size]
    new_h = fused[:B, :hidden_size]
    return out, new_h


# ----------------------------------------------------------------------------
# Full sequence (== torch Rnn.evaluate loop): whole time loop inside ONE
# pallas_call; xs, weights and the hidden state stay VMEM-resident.
# ----------------------------------------------------------------------------
def _rnn_seq_kernel(xs_ref, h0_ref, wx_ref, wh_ref, b_ref, fused_ref, *, seq_len):
    wx = wx_ref[...]
    wh = wh_ref[...]
    # Hoist the bias broadcast out of the recurrence (broadcast_in_dim is not CSE'd).
    b = jnp.broadcast_to(b_ref[...], fused_ref.shape)

    def step(t, h):
        # h is the full 128-lane fused slab from the previous step; lanes >= H
        # hit zero rows of wh and contribute nothing.
        return (jnp.dot(xs_ref[t], wx, preferred_element_type=jnp.float32)
                + jnp.dot(h, wh, preferred_element_type=jnp.float32)
                + b)

    fused = jax.lax.fori_loop(0, seq_len, step, h0_ref[...], unroll=True)
    fused_ref[...] = fused.astype(fused_ref.dtype)   # one lane-dense store


def rnn_sequence(xs, h0, wx, wh, b_cat, *, hidden_size, output_size):
    """Run the RNN over xs (T, B, I).  Returns (final_output, final_hidden)."""
    T, B, I = xs.shape
    assert T >= 1, "rnn_sequence requires at least one timestep"
    Bp = _round_up(max(B, SUBLANE), SUBLANE)

    xs_p = jnp.zeros((T, Bp, I), jnp.float32).at[:, :B].set(xs.astype(jnp.float32))
    h0_p = jnp.zeros((Bp, LANE), jnp.float32).at[:B, :hidden_size].set(
        h0.astype(jnp.float32))

    kernel = functools.partial(_rnn_seq_kernel, seq_len=T)
    fused = pl.pallas_call(
        kernel,
        out_shape=jax.ShapeDtypeStruct((Bp, LANE), jnp.float32),
        grid=(),                                     # time loop lives in-kernel
        in_specs=[_full((T, Bp, I)), _full((Bp, LANE)),
                  _full((I, LANE)), _full((LANE, LANE)), _full((1, LANE))],
        out_specs=_full((Bp, LANE)),
        cost_estimate=pl.CostEstimate(
            flops=2 * T * Bp * (I + LANE) * LANE,
            transcendentals=0,
            bytes_accessed=4 * (T * Bp * I + Bp * LANE + I * LANE
                                + LANE * LANE + LANE + Bp * LANE)),
    )(xs_p, h0_p, wx, wh, b_cat)

    out = fused[:B, hidden_size:hidden_size + output_size]
    final_h = fused[:B, :hidden_size]
    return out, final_h


# ----------------------------------------------------------------------------
# Helpers / self-test
# ----------------------------------------------------------------------------
def _torch_linear_init(key, out_features, in_features):
    """Deterministic init matching nn.Linear default (uniform +/- 1/sqrt(fan_in))."""
    kw, kb = jax.random.split(key)
    bound = 1.0 / jnp.sqrt(jnp.float32(in_features))
    w = jax.random.uniform(kw, (out_features, in_features), jnp.float32, -bound, bound)
    b = jax.random.uniform(kb, (out_features,), jnp.float32, -bound, bound)
    return w, b


if __name__ == "__main__":
    key = jax.random.PRNGKey(0)
    k_x, k_seq, k_i2h, k_i2o = jax.random.split(key, 4)

    batch = 2
    input_size = 16
    hidden_size = 32
    output_size = 8
    seq_len = 8

    x = jax.random.normal(k_x, (batch, input_size), jnp.float32)
    xs = jax.random.normal(k_seq, (seq_len, batch, input_size), jnp.float32)
    h0 = jnp.zeros((batch, hidden_size), jnp.float32)   # init_hidden (per batch row)

    w_i2h, b_i2h = _torch_linear_init(k_i2h, hidden_size, input_size + hidden_size)
    w_i2o, b_i2o = _torch_linear_init(k_i2o, output_size, input_size + hidden_size)

    # One-time layout prep (off the per-step path).
    wx, wh, b_cat = prepare_params(w_i2h, b_i2h, w_i2o, b_i2o)
    jax.block_until_ready((wx, wh, b_cat))

    hi = jax.lax.Precision.HIGHEST

    # ---- single forward step (torch Rnn.forward) ----
    out, new_h = rnn_cell(x, h0, wx, wh, b_cat,
                          hidden_size=hidden_size, output_size=output_size)
    jax.block_until_ready((out, new_h))

    combined = jnp.concatenate([x, h0], axis=1)
    ref_h = jnp.dot(combined, w_i2h.T, precision=hi) + b_i2h
    ref_o = jnp.dot(combined, w_i2o.T, precision=hi) + b_i2o
    assert jnp.allclose(out, ref_o, rtol=1e-4, atol=1e-4), "cell output mismatch"
    assert jnp.allclose(new_h, ref_h, rtol=1e-4, atol=1e-4), "cell hidden mismatch"

    # ---- full sequence (torch Rnn.evaluate loop), time loop inside the kernel ----
    seq_out, seq_h = rnn_sequence(xs, h0, wx, wh, b_cat,
                                  hidden_size=hidden_size, output_size=output_size)
    jax.block_until_ready((seq_out, seq_h))

    h_ref = h0
    o_ref = None
    for t in range(seq_len):
        c = jnp.concatenate([xs[t], h_ref], axis=1)
        o_ref = jnp.dot(c, w_i2o.T, precision=hi) + b_i2o
        h_ref = jnp.dot(c, w_i2h.T, precision=hi) + b_i2h
    assert jnp.allclose(seq_out, o_ref, rtol=1e-4, atol=1e-4), "seq output mismatch"
    assert jnp.allclose(seq_h, h_ref, rtol=1e-4, atol=1e-4), "seq hidden mismatch"

    # TODO(synk): torch train() (loss.backward / optimizer.step) is out of scope
    # for a forward-pass kernel; only forward/evaluate semantics are implemented.
    print("KERNEL_OK")
</pallas_src>

<mosaic_0001>
module attributes {stable_mosaic.version = 11 : i64} {
  func.func @_rnn_cell_kernel(%arg0: memref<8x16xf32, #tpu.memory_space<vmem>>, %arg1: memref<8x128xf32, #tpu.memory_space<vmem>>, %arg2: memref<16x128xf32, #tpu.memory_space<vmem>>, %arg3: memref<128x128xf32, #tpu.memory_space<vmem>>, %arg4: memref<1x128xf32, #tpu.memory_space<vmem>>, %arg5: memref<8x128xf32, #tpu.memory_space<vmem>>) attributes {dimension_semantics = [], scalar_prefetch = 0 : i64, scratch_operands = 0 : i64, tpu.core_type = #tpu.core_type<tc>} {
    %c0 = arith.constant 0 : index
    %c0_0 = arith.constant 0 : index
    %0 = vector.load %arg0[%c0, %c0_0] : memref<8x16xf32, #tpu.memory_space<vmem>>, vector<8x16xf32>
    %c0_1 = arith.constant 0 : index
    %c0_2 = arith.constant 0 : index
    %1 = vector.load %arg2[%c0_1, %c0_2] : memref<16x128xf32, #tpu.memory_space<vmem>>, vector<16x128xf32>
    %cst = arith.constant dense<0.000000e+00> : vector<8x128xf32>
    %2 = tpu.matmul %0, %1, %cst {dimension_numbers = #tpu.dot_dimension_numbers<[1], [0], [0], [1], [0, 0, 1, 1], [], []>} : vector<8x16xf32>, vector<16x128xf32>, vector<8x128xf32> -> vector<8x128xf32>
    %c0_3 = arith.constant 0 : index
    %c0_4 = arith.constant 0 : index
    %3 = vector.load %arg1[%c0_3, %c0_4] : memref<8x128xf32, #tpu.memory_space<vmem>>, vector<8x128xf32>
    %c0_5 = arith.constant 0 : index
    %c0_6 = arith.constant 0 : index
    %4 = vector.load %arg3[%c0_5, %c0_6] : memref<128x128xf32, #tpu.memory_space<vmem>>, vector<128x128xf32>
    %cst_7 = arith.constant dense<0.000000e+00> : vector<8x128xf32>
    %5 = tpu.matmul %3, %4, %cst_7 {dimension_numbers = #tpu.dot_dimension_numbers<[1], [0], [0], [1], [0, 0, 1, 1], [], []>} : vector<8x128xf32>, vector<128x128xf32>, vector<8x128xf32> -> vector<8x128xf32>
    %6 = arith.addf %2, %5 : vector<8x128xf32>
    %c0_8 = arith.constant 0 : index
    %c0_9 = arith.constant 0 : index
    %7 = vector.load %arg4[%c0_8, %c0_9] : memref<1x128xf32, #tpu.memory_space<vmem>>, vector<1x128xf32>
    %8 = vector.broadcast %7 : vector<1x128xf32> to vector<8x128xf32>
    %9 = arith.addf %6, %8 : vector<8x128xf32>
    %c0_10 = arith.constant 0 : index
    %c0_11 = arith.constant 0 : index
    %10 = vector.load %arg5[%c0_10, %c0_11] : memref<8x128xf32, #tpu.memory_space<vmem>>, vector<8x128xf32>
    tpu.vector_store %arg5[%c0_10, %c0_11], %9 {strides = array<i32>} : memref<8x128xf32, #tpu.memory_space<vmem>>, vector<8x128xf32>,
    return
  }
}

</mosaic_0001>

<llo_original>
// kernel: tpu_custom_call.1
$region0: #{tpu_custom_call.1}
  #allocation0 [shape = 'u32[]', space=smem, size = 0x4, offset = 0x4, fixed_abs, tag = 'smem constant byte address 0x4 - core index']
  #allocation1 [shape = 'u32[144,128]{1,0:T(1,128)}', space=vmem, size = 0x12000, scoped, tag = 'internal scratch']
  %s0 = inlined_call_operand.hbm [shape: f32[8,16], index: 0, kind: input, shape index: {}]
  %s1 = inlined_call_operand.hbm [shape: f32[8,128], index: 1, kind: input, shape index: {}]
  %s2 = inlined_call_operand.hbm [shape: f32[16,128], index: 2, kind: input, shape index: {}]
  %s3 = inlined_call_operand.hbm [shape: f32[128,128], index: 3, kind: input, shape index: {}]
  %s4 = inlined_call_operand.vmem [shape: f32[1,128], index: 4, kind: input, shape index: {}]
  %s5 = inlined_call_operand.hbm [shape: f32[8,128], index: 5, kind: output, shape index: {}]
  %s6 = sld [smem:[#allocation0]]
  $region46: #{tpu_custom_call.1} parent=0
    _
  %s8 = ssub.s32 1, %s6
  %s9 = scalar_select 0, %s8, %s6
  $region1: #{tpu_custom_call.1} parent=0
    #allocation2 [shape = 'u8[4096]{0}', space=vmem, size = 0x1000, scoped, tag = 'input window, operand 0, single buffered']
    #allocation3 [shape = 's32[1]{0}', space=sflag, size = 0x4, scoped, tag = 'scoped memory for tpu_custom_call.1']
    #allocation4 [shape = 's32[1]{0}', space=sflag, size = 0x4, scoped, tag = 'scoped memory for tpu_custom_call.1']
    #allocation5 [shape = 'u8[4096]{0}', space=vmem, size = 0x1000, scoped, tag = 'input window, operand 1, single buffered']
    #allocation6 [shape = 's32[1]{0}', space=sflag, size = 0x4, scoped, tag = 'scoped memory for tpu_custom_call.1']
    #allocation7 [shape = 'u8[8192]{0}', space=vmem, size = 0x2000, scoped, tag = 'input window, operand 2, single buffered']
    #allocation8 [shape = 'u8[65536]{0}', space=vmem, size = 0x10000, scoped, tag = 'input window, operand 3, single buffered']
    #allocation9 [shape = 's32[1]{0}', space=sflag, size = 0x4, scoped, tag = 'scoped memory for tpu_custom_call.1']
    #allocation10 [shape = 'u8[4096]{0}', space=vmem, size = 0x1000, scoped, tag = 'output window, operand 0, single buffered']
    %10 = vsyncpa [#allocation3], 0
    %11 = vsyncpa [#allocation6], 0
    %12 = vsyncpa [#allocation9], 0
    %13 = vsyncpa [#allocation4], 0
    // Predicated region
    $region2: #{tpu_custom_call.1} parent=1 // pred_check
      _
    $region3: #{tpu_custom_call.1} parent=1 // pred_check_branch
      %15 = sbr.rel (0) target = $region5
    $region4: #{tpu_custom_call.1} parent=1 // pred_region
      %s17 = ssub.s32 128, 128
      %18 = vsyncadd [#allocation3], %s17
      %s20 = sshll.u32 [#allocation2], 4
      %s21 = int_to_ptr.vmem [resolvable:$true] %s20
      %23 = dma.hbm_to_vmem [thread:$0]  %s0, 128, %s21, [#allocation3]
    $region5: #{tpu_custom_call.1} parent=1 // pred_fallthru
      _
    // Predicated region
    $region6: #{tpu_custom_call.1} parent=1 // pred_check
      _
    $region7: #{tpu_custom_call.1} parent=1 // pred_check_branch
      %25 = sbr.rel (0) target = $region9
    $region8: #{tpu_custom_call.1} parent=1 // pred_region
      %s27 = ssub.s32 128, 128
      %28 = vsyncadd [#allocation6], %s27
      %s30 = sshll.u32 [#allocation5], 4
      %s31 = int_to_ptr.vmem [resolvable:$true] %s30
      %33 = dma.hbm_to_vmem [thread:$0]  %s1, 128, %s31, [#allocation6]
    $region9: #{tpu_custom_call.1} parent=1 // pred_fallthru
      _
    // Predicated region
    $region10: #{tpu_custom_call.1} parent=1 // pred_check
      _
    $region11: #{tpu_custom_call.1} parent=1 // pred_check_branch
      %35 = sbr.rel (0) target = $region13
    $region12: #{tpu_custom_call.1} parent=1 // pred_region
      %s37 = ssub.s32 256, 256
      %38 = vsyncadd [#allocation6], %s37
      %s39 = sshll.u32 [#allocation7], 4
      %s40 = int_to_ptr.vmem [resolvable:$true] %s39
      %45 = dma.hbm_to_vmem [thread:$0]  %s2, 256, %s40, [#allocation6], 128, 128, 8
    $region13: #{tpu_custom_call.1} parent=1 // pred_fallthru
      _
    // Predicated region
    $region14: #{tpu_custom_call.1} parent=1 // pred_check
      _
    $region15: #{tpu_custom_call.1} parent=1 // pred_check_branch
      %47 = sbr.rel (0) target = $region17
    $region16: #{tpu_custom_call.1} parent=1 // pred_region
      %s49 = ssub.s32 2048, 2048
      %50 = vsyncadd [#allocation9], %s49
      %s51 = sshll.u32 [#allocation8], 4
      %s52 = int_to_ptr.vmem [resolvable:$true] %s51
      %57 = dma.hbm_to_vmem [thread:$0]  %s3, 2048, %s52, [#allocation9], 128, 128, 8
    $region17: #{tpu_custom_call.1} parent=1 // pred_fallthru
      _
    // Predicated region
    $region18: #{tpu_custom_call.1} parent=1 // pred_check
      _
    $region19: #{tpu_custom_call.1} parent=1 // pred_check_branch
      %59 = sbr.rel (0) target = $region21
    $region20: #{tpu_custom_call.1} parent=1 // pred_region
      _
    $region21: #{tpu_custom_call.1} parent=1 // pred_fallthru
      _
    // Predicated region
    $region22: #{tpu_custom_call.1} parent=1 // pred_check
      _
    $region23: #{tpu_custom_call.1} parent=1 // pred_check_branch
      %61 = sbr.rel (0) target = $region25
    $region24: #{tpu_custom_call.1} parent=1 // pred_region
      %62 = dma.done [#allocation3], 128
    $region25: #{tpu_custom_call.1} parent=1 // pred_fallthru
      _
    // Predicated region
    $region26: #{tpu_custom_call.1} parent=1 // pred_check
      _
    $region27: #{tpu_custom_call.1} parent=1 // pred_check_branch
      %64 = sbr.rel (0) target = $region29
    $region28: #{tpu_custom_call.1} parent=1 // pred_region
      %65 = dma.done [#allocation6], 128
    $region29: #{tpu_custom_call.1} parent=1 // pred_fallthru
      _
    // Predicated region
    $region30: #{tpu_custom_call.1} parent=1 // pred_check
      _
    $region31: #{tpu_custom_call.1} parent=1 // pred_check_branch
      %67 = sbr.rel (0) target = $region33
    $region32: #{tpu_custom_call.1} parent=1 // pred_region
      %68 = dma.done [#allocation6], 256
    $region33: #{tpu_custom_call.1} parent=1 // pred_fallthru
      _
    // Predicated region
    $region34: #{tpu_custom_call.1} parent=1 // pred_check
      _
    $region35: #{tpu_custom_call.1} parent=1 // pred_check_branch
      %70 = sbr.rel (0) target = $region37
    $region36: #{tpu_custom_call.1} parent=1 // pred_region
      %71 = dma.done [#allocation9], 2048
    $region37: #{tpu_custom_call.1} parent=1 // pred_fallthru
      _
    %v72 = vld [vmem:[#allocation2] sm:$0xff]
    %v73 = vld [vmem:[#allocation7] sm:$0xff]
    %v74 = vld [vmem:[#allocation7 + $0x8] sm:$0xff]
    %v75 = vld [vmem:[#allocation5] sm:$0xff]
    %v76 = vld [vmem:[#allocation8] sm:$0xff]
    %v77 = vld [vmem:[#allocation8 + $0x8] sm:$0xff]
    %v78 = vld [vmem:[#allocation8 + $0x10] sm:$0xff]
    %v79 = vld [vmem:[#allocation8 + $0x18] sm:$0xff]
    %v80 = vld [vmem:[#allocation8 + $0x20] sm:$0xff]
    %v81 = vld [vmem:[#allocation8 + $0x28] sm:$0xff]
    %v82 = vld [vmem:[#allocation8 + $0x30] sm:$0xff]
    %v83 = vld [vmem:[#allocation8 + $0x38] sm:$0xff]
    %v84 = vld [vmem:[#allocation8 + $0x40] sm:$0xff]
    %v85 = vld [vmem:[#allocation8 + $0x48] sm:$0xff]
    %v86 = vld [vmem:[#allocation8 + $0x50] sm:$0xff]
    %v87 = vld [vmem:[#allocation8 + $0x58] sm:$0xff]
    %v88 = vld [vmem:[#allocation8 + $0x60] sm:$0xff]
    %v89 = vld [vmem:[#allocation8 + $0x68] sm:$0xff]
    %v90 = vld [vmem:[#allocation8 + $0x70] sm:$0xff]
    %v91 = vld [vmem:[#allocation8 + $0x78] sm:$0xff]
    %92 = vmatprep.subr.mxu0 0.0
    %93 = vmatpush1.msra.mxu0 %v91
    %94 = vmatprep.subr.mxu0 0.0
    %95 = vmatpush1.msra.mxu0 %v90
    %96 = vmatprep.subr.mxu0 0.0
    %97 = vmatpush1.msra.mxu0 %v89
    %98 = vmatprep.subr.mxu0 0.0
    %99 = vmatpush1.msra.mxu0 %v88
    %100 = vmatprep.subr.mxu0 0.0
    %101 = vmatpush1.msra.mxu0 %v87
    %102 = vmatprep.subr.mxu0 0.0
    %103 = vmatpush1.msra.mxu0 %v86
    %104 = vmatprep.subr.mxu0 0.0
    %105 = vmatpush1.msra.mxu0 %v85
    %106 = vmatprep.subr.mxu0 0.0
    %107 = vmatpush1.msra.mxu0 %v84
    %108 = vmatprep.subr.mxu0 0.0
    %109 = vmatpush1.msra.mxu0 %v83
    %110 = vmatprep.subr.mxu0 0.0
    %111 = vmatpush1.msra.mxu0 %v82
    %112 = vmatprep.subr.mxu0 0.0
    %113 = vmatpush1.msra.mxu0 %v81
    %114 = vmatprep.subr.mxu0 0.0
    %115 = vmatpush1.msra.mxu0 %v80
    %116 = vmatprep.subr.mxu0 0.0
    %117 = vmatpush1.msra.mxu0 %v79
    %118 = vmatprep.subr.mxu0 0.0
    %119 = vmatpush1.msra.mxu0 %v78
    %120 = vmatprep.subr.mxu0 0.0
    %121 = vmatpush1.msra.mxu0 %v77
    %122 = vmatprep.subr.mxu0 0.0
    %123 = vmatpush1.msra.mxu0 %v76
    %124 = vmatprep.subr.mxu0 0.0
    %125 = vmatpush2.msra.mxu0 0.0
    %126 = vmatprep.subr.mxu0 0.0
    %127 = vmatpush2.msra.mxu0 0.0
    %128 = vmatprep.subr.mxu0 0.0
    %129 = vmatpush2.msra.mxu0 0.0
    %130 = vmatprep.subr.mxu0 0.0
    %131 = vmatpush2.msra.mxu0 0.0
    %132 = vmatprep.subr.mxu0 0.0
    %133 = vmatpush2.msra.mxu0 0.0
    %134 = vmatprep.subr.mxu0 0.0
    %135 = vmatpush2.msra.mxu0 0.0
    %136 = vmatprep.subr.mxu0 0.0
    %137 = vmatpush2.msra.mxu0 0.0
    %138 = vmatprep.subr.mxu0 0.0
    %139 = vmatpush2.msra.mxu0 0.0
    %140 = vmatprep.subr.mxu0 0.0
    %141 = vmatpush2.msra.mxu0 0.0
    %142 = vmatprep.subr.mxu0 0.0
    %143 = vmatpush2.msra.mxu0 0.0
    %144 = vmatprep.subr.mxu0 0.0
    %145 = vmatpush2.msra.mxu0 0.0
    %146 = vmatprep.subr.mxu0 0.0
    %147 = vmatpush2.msra.mxu0 0.0
    %148 = vmatprep.subr.mxu0 0.0
    %149 = vmatpush2.msra.mxu0 0.0
    %150 = vmatprep.subr.mxu0 0.0
    %151 = vmatpush2.msra.mxu0 0.0
    %152 = vmatprep.subr.mxu0 0.0
    %153 = vmatpush2.msra.mxu0 0.0
    %154 = vmatprep.subr.mxu0 0.0
    %155 = vmatpush2.msra.mxu0 0.0
    %156 = vmatprep.mubr.f32.mxu0 0.0
    %157 = vmatmul.mubr.f32.gmra.mxu0 %v75
    %v158 = vpop.f32.mrf.mxu0
    %v159 = vadd.f32 0.0, %v158
    %v160 = vpop.f32.mrf.mxu0
    %161 = vdwg.mxu0
    %vm162 = vcmask 130048
    %v164 = vsel %vm162, %v72, 0
    %166 = vmatprep.subr.mxu0 0.0
    %167 = vmatpush1.msra.mxu0 0.0
    %168 = vmatprep.subr.mxu0 0.0
    %169 = vmatpush1.msra.mxu0 0.0
    %170 = vmatprep.subr.mxu0 0.0
    %171 = vmatpush1.msra.mxu0 0.0
    %172 = vmatprep.subr.mxu0 0.0
    %173 = vmatpush1.msra.mxu0 0.0
    %174 = vmatprep.subr.mxu0 0.0
    %175 = vmatpush1.msra.mxu0 0.0
    %176 = vmatprep.subr.mxu0 0.0
    %177 = vmatpush1.msra.mxu0 0.0
    %178 = vmatprep.subr.mxu0 0.0
    %179 = vmatpush1.msra.mxu0 0.0
    %180 = vmatprep.subr.mxu0 0.0
    %181 = vmatpush1.msra.mxu0 0.0
    %182 = vmatprep.subr.mxu0 0.0
    %183 = vmatpush1.msra.mxu0 0.0
    %184 = vmatprep.subr.mxu0 0.0
    %185 = vmatpush1.msra.mxu0 0.0
    %186 = vmatprep.subr.mxu0 0.0
    %187 = vmatpush1.msra.mxu0 0.0
    %188 = vmatprep.subr.mxu0 0.0
    %189 = vmatpush1.msra.mxu0 0.0
    %190 = vmatprep.subr.mxu0 0.0
    %191 = vmatpush1.msra.mxu0 0.0
    %192 = vmatprep.subr.mxu0 0.0
    %193 = vmatpush1.msra.mxu0 0.0
    %194 = vmatprep.subr.mxu0 0.0
    %195 = vmatpush1.msra.mxu0 %v74
    %196 = vmatprep.subr.mxu0 0.0
    %197 = vmatpush1.msra.mxu0 %v73
    %198 = vmatprep.subr.mxu0 0.0
    %199 = vmatpush2.msra.mxu0 0.0
    %200 = vmatprep.subr.mxu0 0.0
    %201 = vmatpush2.msra.mxu0 0.0
    %202 = vmatprep.subr.mxu0 0.0
    %203 = vmatpush2.msra.mxu0 0.0
    %204 = vmatprep.subr.mxu0 0.0
    %205 = vmatpush2.msra.mxu0 0.0
    %206 = vmatprep.subr.mxu0 0.0
    %207 = vmatpush2.msra.mxu0 0.0
    %208 = vmatprep.subr.mxu0 0.0
    %209 = vmatpush2.msra.mxu0 0.0
    %210 = vmatprep.subr.mxu0 0.0
    %211 = vmatpush2.msra.mxu0 0.0
    %212 = vmatprep.subr.mxu0 0.0
    %213 = vmatpush2.msra.mxu0 0.0
    %214 = vmatprep.subr.mxu0 0.0
    %215 = vmatpush2.msra.mxu0 0.0
    %216 = vmatprep.subr.mxu0 0.0
    %217 = vmatpush2.msra.mxu0 0.0
    %218 = vmatprep.subr.mxu0 0.0
    %219 = vmatpush2.msra.mxu0 0.0
    %220 = vmatprep.subr.mxu0 0.0
    %221 = vmatpush2.msra.mxu0 0.0
    %222 = vmatprep.subr.mxu0 0.0
    %223 = vmatpush2.msra.mxu0 0.0
    %224 = vmatprep.subr.mxu0 0.0
    %225 = vmatpush2.msra.mxu0 0.0
    %226 = vmatprep.subr.mxu0 0.0
    %227 = vmatpush2.msra.mxu0 0.0
    %228 = vmatprep.subr.mxu0 0.0
    %229 = vmatpush2.msra.mxu0 0.0
    %230 = vmatprep.mubr.f32.mxu0 0.0
    %231 = vmatmul.mubr.f32.gmra.mxu0 %v164
    %v232 = vpop.f32.mrf.mxu0
    %v233 = vadd.f32 %v159, %v232
    %v234 = vpop.f32.mrf.mxu0
    %235 = vdwg.mxu0
    %v236 = vld [vmem:[%s4] sm:$0x1]
    %v238 = vlaneseq
    %v239 = vshrl.u32 %v238, 7
    %v240 = vsub.s32 0, %v239
    %v241 = vrot.slane %v236, %v240
    %v243 = vadd.f32 %v233, %v241
    %244 = vst [vmem:[#allocation10] sm:$0xff] %v243
    // Predicated region
    $region38: #{tpu_custom_call.1} parent=1 // pred_check
      _
    $region39: #{tpu_custom_call.1} parent=1 // pred_check_branch
      %246 = sbr.rel (0) target = $region41
    $region40: #{tpu_custom_call.1} parent=1 // pred_region
      %s248 = ssub.s32 128, 128
      %249 = vsyncadd [#allocation4], %s248
      %s251 = sshll.u32 [#allocation10], 4
      %s252 = int_to_ptr.vmem [resolvable:$true] %s251
      %254 = dma.vmem_to_hbm [thread:$0]  %s252, 128, %s5, [#allocation4]
    $region41: #{tpu_custom_call.1} parent=1 // pred_fallthru
      _
    // Predicated region
    $region42: #{tpu_custom_call.1} parent=1 // pred_check
      _
    $region43: #{tpu_custom_call.1} parent=1 // pred_check_branch
      %256 = sbr.rel (0) target = $region45
    $region44: #{tpu_custom_call.1} parent=1 // pred_region
      %257 = dma.done [#allocation4], 128
    $region45: #{tpu_custom_call.1} parent=1 // pred_fallthru
      _
    %258 = vsyncpa [#allocation3], 1
    %259 = vsyncpa [#allocation6], 1
    %260 = vsyncpa [#allocation9], 1
    %261 = vsyncpa [#allocation4], 1

</llo_original>
